<compile_context>
chip_gen: v7x
topology: tpu7x:2x2x1
jax: 0.10.0
libtpu: 0.0.40
codegen_flags: <defaults>
</compile_context>

<pallas_src>
import math
import functools

import jax
import jax.numpy as jnp
from jax import lax
from jax.experimental import pallas as pl
from jax.experimental.pallas import tpu as pltpu


_MASK_VALUE = -1e30  # large finite negative (bf16-safe) instead of -inf


# ----------------------------- in-kernel helpers -----------------------------

def _layer_norm(x, gamma, beta, eps=1e-5):
    # PyTorch nn.LayerNorm: biased variance, eps inside sqrt.  Kept in f32.
    mean = jnp.mean(x, axis=-1, keepdims=True)
    var = jnp.mean((x - mean) ** 2, axis=-1, keepdims=True)
    return (x - mean) * lax.rsqrt(var + eps) * gamma + beta


def _new_gelu(x):
    c = math.sqrt(2.0 / math.pi)
    return 0.5 * x * (1.0 + jnp.tanh(c * (x + 0.044715 * x * x * x)))


# ------------------------- pass 1: ln_1 + QKV projection ----------------------

def qkv_kernel(x_ref, ln1_g_ref, ln1_b_ref,
               w_q_ref, b_q_ref, w_k_ref, b_k_ref, w_v_ref, b_v_ref,
               q_ref, k_ref, v_ref,
               *, n_head, head_dim):
    cd = w_q_ref.dtype                      # compute dtype (bf16 weights => bf16 MXU)
    x = x_ref[0]                            # (TT, C) rows of x
    h = _layer_norm(x, ln1_g_ref[0], ln1_b_ref[0]).astype(cd)

    q = jnp.dot(h, w_q_ref[...], preferred_element_type=jnp.float32) + b_q_ref[0]
    k = jnp.dot(h, w_k_ref[...], preferred_element_type=jnp.float32) + b_k_ref[0]
    v = jnp.dot(h, w_v_ref[...], preferred_element_type=jnp.float32) + b_v_ref[0]

    # Split heads once (per token, not per q-tile) into head-major HBM outputs.
    for hi in range(n_head):
        s = hi * head_dim
        q_ref[0, hi] = q[:, s:s + head_dim].astype(q_ref.dtype)
        k_ref[0, hi] = k[:, s:s + head_dim].astype(k_ref.dtype)
        v_ref[0, hi] = v[:, s:s + head_dim].astype(v_ref.dtype)


# ------------- pass 2: flash-style causal attention + proj + MLP --------------

def attn_mlp_kernel(x_ref, q_ref, k_ref, v_ref,
                    w_ap_ref, b_ap_ref,
                    ln2_g_ref, ln2_b_ref,
                    w_fc_ref, b_fc_ref,
                    w_mp_ref, b_mp_ref,
                    o_ref,
                    m_scr, l_scr, acc_scr,
                    *, n_head, head_dim, q_tile, kv_tile):
    TQ, TK = q_tile, kv_tile
    C = n_head * head_dim
    cd = w_ap_ref.dtype
    qi = pl.program_id(1)
    ki = pl.program_id(2)
    row0 = qi * TQ
    col0 = ki * TK

    @pl.when(ki == 0)
    def _init():
        m_scr[...] = jnp.full_like(m_scr, _MASK_VALUE)
        l_scr[...] = jnp.zeros_like(l_scr)
        acc_scr[...] = jnp.zeros_like(acc_scr)

    # Skip fully-masked KV tiles entirely (their DMA is also clamped in the wrapper).
    @pl.when(col0 <= row0 + TQ - 1)
    def _update():
        qh = q_ref[0].astype(cd)            # (H, TQ, hd)
        kh = k_ref[0].astype(cd)            # (H, TK, hd)
        vh = v_ref[0].astype(cd)            # (H, TK, hd)

        s = jnp.einsum("hqd,hkd->hqk", qh, kh,
                       preferred_element_type=jnp.float32)
        s = s * (1.0 / math.sqrt(head_dim))

        rows = row0 + lax.broadcasted_iota(jnp.int32, (TQ, TK), 0)
        cols = col0 + lax.broadcasted_iota(jnp.int32, (TQ, TK), 1)
        bias = jnp.where(rows >= cols, 0.0, _MASK_VALUE)      # additive causal bias
        s = s + bias[None].astype(jnp.float32)

        m_prev = m_scr[...]
        m_new = jnp.maximum(m_prev, jnp.max(s, axis=-1, keepdims=True))
        alpha = jnp.exp(m_prev - m_new)
        p = jnp.exp(s - m_new)
        l_scr[...] = alpha * l_scr[...] + jnp.sum(p, axis=-1, keepdims=True)
        acc_scr[...] = alpha * acc_scr[...] + jnp.einsum(
            "hqk,hkd->hqd", p.astype(cd), vh, preferred_element_type=jnp.float32)
        m_scr[...] = m_new

    @pl.when(ki == pl.num_programs(2) - 1)
    def _finalize():
        y = acc_scr[...] * pl.reciprocal(l_scr[...], approx=True)   # (H, TQ, hd) f32

        # Head merge fused into the output projection: w_ap_ref is (H, hd, C),
        # accumulate per-head matmuls into a single (TQ, C) f32 accumulator
        # (no (TQ,C) scratch slab, no masked per-head stores).
        att = jnp.zeros((TQ, C), jnp.float32)
        for hi in range(n_head):
            att = att + jnp.dot(y[hi].astype(cd), w_ap_ref[hi],
                                preferred_element_type=jnp.float32)
        att = att + b_ap_ref[0]

        r1 = x_ref[0] + att                     # first residual
        h2 = _layer_norm(r1, ln2_g_ref[0], ln2_b_ref[0])
        f = jnp.dot(h2.astype(cd), w_fc_ref[...],
                    preferred_element_type=jnp.float32) + b_fc_ref[0]
        f = _new_gelu(f)
        m = jnp.dot(f.astype(cd), w_mp_ref[...],
                    preferred_element_type=jnp.float32) + b_mp_ref[0]
        o_ref[0] = (r1 + m).astype(o_ref.dtype)


# --------------------------------- wrapper ------------------------------------

def _pick_tile(T, prefs=(256, 128, 64, 32, 16, 8)):
    for cand in prefs:
        if cand <= T and T % cand == 0:
            return cand
    return T


def _vmem_ceiling_bytes():
    cap = 64 * 1024 * 1024
    try:
        cap = int(pltpu.get_tpu_info().vmem_capacity_bytes)
    except Exception:
        pass
    return (cap * 7) // 8          # headroom for compiler temporaries


def _clamp_vmem(est_bytes):
    return int(min(max(est_bytes, 32 * 1024 * 1024), _vmem_ceiling_bytes()))


def gpt2_block(x, params, *, n_head, q_tile=None, kv_tile=None, qkv_tile=None):
    """x: (B, T, C).  params: dict of pre-transposed weights (f32 or bf16)."""
    B, T, C = x.shape
    assert C % n_head == 0
    hd = C // n_head
    cd = params["w_fc"].dtype                 # compute / intermediate dtype
    it_cd = jnp.dtype(cd).itemsize
    it_x = x.dtype.itemsize

    # ---- wrapper-side weight prep (free at trace time) ----
    w_qkv, b_qkv = params["w_qkv"], params["b_qkv"]
    w_q, w_k, w_v = w_qkv[:, :C], w_qkv[:, C:2 * C], w_qkv[:, 2 * C:]
    b_q, b_k, b_v = b_qkv[:, :C], b_qkv[:, C:2 * C], b_qkv[:, 2 * C:]
    w_ap = params["w_attn_proj"].reshape(n_head, hd, C)   # fused merge+projection

    # ================= pass 1: ln_1 + QKV projection (once per token) ==========
    TT = qkv_tile if qkv_tile is not None else _pick_tile(T)
    assert T % TT == 0

    qkv_weights = [params["ln1_g"], params["ln1_b"],
                   w_q, b_q, w_k, b_k, w_v, b_v]

    def const2(p):
        nd = p.ndim
        return pl.BlockSpec(p.shape, lambda b, t: (0,) * nd)

    w1 = sum(p.size * p.dtype.itemsize for p in qkv_weights)
    blk1 = TT * C * it_x + 3 * TT * C * it_cd
    est1 = 2 * (w1 + blk1) + 6 * TT * C * 4

    q, k, v = pl.pallas_call(
        functools.partial(qkv_kernel, n_head=n_head, head_dim=hd),
        out_shape=(jax.ShapeDtypeStruct((B, n_head, T, hd), cd),) * 3,
        grid_spec=pltpu.PrefetchScalarGridSpec(
            num_scalar_prefetch=0,
            grid=(B, T // TT),
            in_specs=[pl.BlockSpec((1, TT, C), lambda b, t: (b, t, 0))]
                     + [const2(p) for p in qkv_weights],
            out_specs=[pl.BlockSpec((1, n_head, TT, hd),
                                    lambda b, t: (b, 0, t, 0))] * 3,
        ),
        compiler_params=pltpu.CompilerParams(
            dimension_semantics=("parallel", "parallel"),
            vmem_limit_bytes=_clamp_vmem(est1)),
    )(x, *qkv_weights)

    # ====== pass 2: flash attention (online softmax) + proj + residual + MLP ===
    TQ = q_tile if q_tile is not None else _pick_tile(T)
    TK = kv_tile if kv_tile is not None else _pick_tile(T)
    assert T % TQ == 0 and T % TK == 0
    n_qt, n_kt = T // TQ, T // TK

    attn_weights = [w_ap, params["b_attn_proj"],
                    params["ln2_g"], params["ln2_b"],
                    params["w_fc"], params["b_fc"],
                    params["w_mlp_proj"], params["b_mlp_proj"]]

    def const3(p):
        nd = p.ndim
        return pl.BlockSpec(p.shape, lambda b, qi, ki: (0,) * nd)

    def kv_map(b, qi, ki):
        # Causal clamp: fully-masked KV tiles map to the last needed block, so the
        # pipeline does not issue fresh DMAs for tiles the kernel will skip.
        last_needed = ((qi + 1) * TQ - 1) // TK
        return (b, 0, jnp.minimum(ki, last_needed), 0)

    in_specs = [
        pl.BlockSpec((1, TQ, C), lambda b, qi, ki: (b, qi, 0)),            # x rows
        pl.BlockSpec((1, n_head, TQ, hd), lambda b, qi, ki: (b, 0, qi, 0)),  # Q
        pl.BlockSpec((1, n_head, TK, hd), kv_map),                         # K
        pl.BlockSpec((1, n_head, TK, hd), kv_map),                         # V
    ] + [const3(p) for p in attn_weights]

    scratch_shapes = [
        pltpu.VMEM((n_head, TQ, 1), jnp.float32),    # running max
        pltpu.VMEM((n_head, TQ, 1), jnp.float32),    # running denom
        pltpu.VMEM((n_head, TQ, hd), jnp.float32),   # running PV accumulator
    ]

    w2 = sum(p.size * p.dtype.itemsize for p in attn_weights)
    blk2 = (2 * TQ * C * it_x
            + n_head * TQ * hd * it_cd
            + 2 * n_head * TK * hd * it_cd)
    scr2 = n_head * TQ * (hd + 2) * 4
    score2 = 3 * n_head * TQ * TK * 4
    act2 = (8 * TQ * C + 2 * 4 * TQ * C) * 4
    est2 = 2 * (w2 + blk2) + scr2 + score2 + act2

    out = pl.pallas_call(
        functools.partial(attn_mlp_kernel, n_head=n_head, head_dim=hd,
                          q_tile=TQ, kv_tile=TK),
        out_shape=jax.ShapeDtypeStruct((B, T, C), x.dtype),
        grid_spec=pltpu.PrefetchScalarGridSpec(
            num_scalar_prefetch=0,
            grid=(B, n_qt, n_kt),
            in_specs=in_specs,
            out_specs=pl.BlockSpec((1, TQ, C), lambda b, qi, ki: (b, qi, 0)),
            scratch_shapes=scratch_shapes,
        ),
        compiler_params=pltpu.CompilerParams(
            dimension_semantics=("parallel", "parallel", "arbitrary"),
            vmem_limit_bytes=_clamp_vmem(est2)),
    )(x, q, k, v, *attn_weights)

    return out


# ----------------------- pure-JAX reference (for checking) --------------------

def gpt2_block_ref(x, params, *, n_head):
    B, T, C = x.shape
    hd = C // n_head

    def ln(z, g, b):
        return _layer_norm(z, g[0], b[0])

    h = ln(x, params["ln1_g"], params["ln1_b"])
    qkv = jnp.einsum("btc,cd->btd", h, params["w_qkv"]) + params["b_qkv"][0]
    q, k, v = jnp.split(qkv, 3, axis=-1)
    q = q.reshape(B, T, n_head, hd).transpose(0, 2, 1, 3)
    k = k.reshape(B, T, n_head, hd).transpose(0, 2, 1, 3)
    v = v.reshape(B, T, n_head, hd).transpose(0, 2, 1, 3)
    att = jnp.einsum("bhqd,bhkd->bhqk", q, k) / math.sqrt(hd)
    mask = jnp.tril(jnp.ones((T, T), bool))
    att = jnp.where(mask[None, None], att, -jnp.inf)
    att = jax.nn.softmax(att, axis=-1)
    y = jnp.einsum("bhqk,bhkd->bhqd", att, v)
    y = y.transpose(0, 2, 1, 3).reshape(B, T, C)
    y = jnp.einsum("btc,cd->btd", y, params["w_attn_proj"]) + params["b_attn_proj"][0]
    r1 = x + y
    h2 = ln(r1, params["ln2_g"], params["ln2_b"])
    f = _new_gelu(jnp.einsum("btc,cd->btd", h2, params["w_fc"]) + params["b_fc"][0])
    m = jnp.einsum("btc,cd->btd", f, params["w_mlp_proj"]) + params["b_mlp_proj"][0]
    return r1 + m


# ----------------------------------- main -------------------------------------

if __name__ == "__main__":
    # Small but lane-dense shapes (C multiple of 128) consistent with the module.
    B, T, C, n_head = 2, 16, 128, 4

    key = jax.random.PRNGKey(0)
    ks = jax.random.split(key, 12)

    def init_w(k, shape, scale=0.02):
        return (scale * jax.random.normal(k, shape)).astype(jnp.float32)

    params = {
        "ln1_g": (1.0 + 0.1 * jax.random.normal(ks[5], (1, C))).astype(jnp.float32),
        "ln1_b": (0.1 * jax.random.normal(ks[6], (1, C))).astype(jnp.float32),
        "w_qkv": init_w(ks[0], (C, 3 * C)),
        "b_qkv": init_w(ks[7], (1, 3 * C), 0.01),
        "w_attn_proj": init_w(ks[1], (C, C)),
        "b_attn_proj": init_w(ks[8], (1, C), 0.01),
        "ln2_g": (1.0 + 0.1 * jax.random.normal(ks[9], (1, C))).astype(jnp.float32),
        "ln2_b": (0.1 * jax.random.normal(ks[10], (1, C))).astype(jnp.float32),
        "w_fc": init_w(ks[2], (C, 4 * C)),
        "b_fc": init_w(ks[11], (1, 4 * C), 0.01),
        "w_mlp_proj": init_w(ks[3], (4 * C, C)),
        "b_mlp_proj": jnp.zeros((1, C), jnp.float32),
    }

    x = jax.random.normal(ks[4], (B, T, C), jnp.float32)

    # q_tile=kv_tile=8 -> 2 q tiles x 2 kv tiles per batch element: exercises the
    # flash-style grid, the online-softmax accumulators and the causal tile skip
    # (q-tile 0 skips kv-tile 1).
    out = jax.block_until_ready(
        gpt2_block(x, params, n_head=n_head, q_tile=8, kv_tile=8, qkv_tile=8))
    ref = jax.block_until_ready(gpt2_block_ref(x, params, n_head=n_head))

    assert out.shape == (B, T, C)
    assert bool(jnp.all(jnp.isfinite(out)))
    # Tolerance accounts for the EUP approximate reciprocal in the softmax.
    max_err = float(jnp.max(jnp.abs(out - ref)))
    assert bool(jnp.allclose(out, ref, atol=5e-4, rtol=5e-4)), (
        "mismatch vs JAX reference: max abs err = %g" % max_err)

    print("KERNEL_OK")
</pallas_src>

<mosaic_0001>
module attributes {stable_mosaic.version = 11 : i64} {
  func.func @qkv_kernel(%arg0: i32, %arg1: i32, %arg2: memref<1x8x128xf32, #tpu.memory_space<vmem>>, %arg3: memref<1x128xf32, #tpu.memory_space<vmem>>, %arg4: memref<1x128xf32, #tpu.memory_space<vmem>>, %arg5: memref<128x128xf32, #tpu.memory_space<vmem>>, %arg6: memref<1x128xf32, #tpu.memory_space<vmem>>, %arg7: memref<128x128xf32, #tpu.memory_space<vmem>>, %arg8: memref<1x128xf32, #tpu.memory_space<vmem>>, %arg9: memref<128x128xf32, #tpu.memory_space<vmem>>, %arg10: memref<1x128xf32, #tpu.memory_space<vmem>>, %arg11: memref<1x4x8x32xf32, #tpu.memory_space<vmem>>, %arg12: memref<1x4x8x32xf32, #tpu.memory_space<vmem>>, %arg13: memref<1x4x8x32xf32, #tpu.memory_space<vmem>>) attributes {dimension_semantics = [#tpu.dimension_semantics<parallel>, #tpu.dimension_semantics<parallel>], iteration_bounds = array<i64: 2, 2>, scalar_prefetch = 0 : i64, scratch_operands = 0 : i64, tpu.core_type = #tpu.core_type<tc>, window_params = [{transform_indices = @transform_0, window_bounds = array<i64: 1, 8, 128>}, {pipeline_mode = #tpu.pipeline_mode<synchronous>, transform_indices = @transform_1, window_bounds = array<i64: 1, 128>}, {pipeline_mode = #tpu.pipeline_mode<synchronous>, transform_indices = @transform_2, window_bounds = array<i64: 1, 128>}, {pipeline_mode = #tpu.pipeline_mode<synchronous>, transform_indices = @transform_3, window_bounds = array<i64: 128, 128>}, {pipeline_mode = #tpu.pipeline_mode<synchronous>, transform_indices = @transform_4, window_bounds = array<i64: 1, 128>}, {pipeline_mode = #tpu.pipeline_mode<synchronous>, transform_indices = @transform_5, window_bounds = array<i64: 128, 128>}, {pipeline_mode = #tpu.pipeline_mode<synchronous>, transform_indices = @transform_6, window_bounds = array<i64: 1, 128>}, {pipeline_mode = #tpu.pipeline_mode<synchronous>, transform_indices = @transform_7, window_bounds = array<i64: 128, 128>}, {pipeline_mode = #tpu.pipeline_mode<synchronous>, transform_indices = @transform_8, window_bounds = array<i64: 1, 128>}, {transform_indices = @transform_9, window_bounds = array<i64: 1, 4, 8, 32>}, {transform_indices = @transform_10, window_bounds = array<i64: 1, 4, 8, 32>}, {transform_indices = @transform_11, window_bounds = array<i64: 1, 4, 8, 32>}]} {
    %c0 = arith.constant 0 : index
    %c0_0 = arith.constant 0 : index
    %c0_1 = arith.constant 0 : index
    %0 = vector.load %arg2[%c0, %c0_0, %c0_1] : memref<1x8x128xf32, #tpu.memory_space<vmem>>, vector<1x8x128xf32>
    %1 = vector.shape_cast %0 : vector<1x8x128xf32> to vector<8x128xf32>
    %c0_2 = arith.constant 0 : index
    %c0_3 = arith.constant 0 : index
    %2 = vector.load %arg3[%c0_2, %c0_3] : memref<1x128xf32, #tpu.memory_space<vmem>>, vector<1x128xf32>
    %3 = vector.shape_cast %2 : vector<1x128xf32> to vector<128xf32>
    %c0_4 = arith.constant 0 : index
    %c0_5 = arith.constant 0 : index
    %4 = vector.load %arg4[%c0_4, %c0_5] : memref<1x128xf32, #tpu.memory_space<vmem>>, vector<1x128xf32>
    %5 = vector.shape_cast %4 : vector<1x128xf32> to vector<128xf32>
    %cst = arith.constant dense<0.000000e+00> : vector<8xf32>
    %6 = vector.multi_reduction <add>, %1, %cst [1] : vector<8x128xf32> to vector<8xf32>
    %7 = vector.shape_cast %6 : vector<8xf32> to vector<8x1xf32>
    %cst_6 = arith.constant 1.280000e+02 : f32
    %8 = vector.broadcast %cst_6 : f32 to vector<8x1xf32>
    %9 = arith.divf %7, %8 : vector<8x1xf32>
    %10 = vector.broadcast %9 : vector<8x1xf32> to vector<8x128xf32>
    %11 = arith.subf %1, %10 : vector<8x128xf32>
    %12 = arith.mulf %11, %11 : vector<8x128xf32>
    %cst_7 = arith.constant dense<0.000000e+00> : vector<8xf32>
    %13 = vector.multi_reduction <add>, %12, %cst_7 [1] : vector<8x128xf32> to vector<8xf32>
    %14 = vector.shape_cast %13 : vector<8xf32> to vector<8x1xf32>
    %cst_8 = arith.constant 1.280000e+02 : f32
    %15 = vector.broadcast %cst_8 : f32 to vector<8x1xf32>
    %16 = arith.divf %14, %15 : vector<8x1xf32>
    %17 = vector.broadcast %9 : vector<8x1xf32> to vector<8x128xf32>
    %18 = arith.subf %1, %17 : vector<8x128xf32>
    %cst_9 = arith.constant 9.99999974E-6 : f32
    %19 = vector.broadcast %cst_9 : f32 to vector<8x1xf32>
    %20 = arith.addf %16, %19 : vector<8x1xf32>
    %21 = math.rsqrt %20 : vector<8x1xf32>
    %22 = vector.broadcast %21 : vector<8x1xf32> to vector<8x128xf32>
    %23 = arith.mulf %18, %22 : vector<8x128xf32>
    %24 = vector.shape_cast %3 : vector<128xf32> to vector<1x128xf32>
    %25 = vector.broadcast %24 : vector<1x128xf32> to vector<8x128xf32>
    %26 = arith.mulf %23, %25 : vector<8x128xf32>
    %27 = vector.shape_cast %5 : vector<128xf32> to vector<1x128xf32>
    %28 = vector.broadcast %27 : vector<1x128xf32> to vector<8x128xf32>
    %29 = arith.addf %26, %28 : vector<8x128xf32>
    %c0_10 = arith.constant 0 : index
    %c0_11 = arith.constant 0 : index
    %30 = vector.load %arg5[%c0_10, %c0_11] : memref<128x128xf32, #tpu.memory_space<vmem>>, vector<128x128xf32>
    %cst_12 = arith.constant dense<0.000000e+00> : vector<8x128xf32>
    %31 = tpu.matmul %29, %30, %cst_12 {dimension_numbers = #tpu.dot_dimension_numbers<[1], [0], [0], [1], [0, 0, 1, 1], [], []>} : vector<8x128xf32>, vector<128x128xf32>, vector<8x128xf32> -> vector<8x128xf32>
    %c0_13 = arith.constant 0 : index
    %c0_14 = arith.constant 0 : index
    %32 = vector.load %arg6[%c0_13, %c0_14] : memref<1x128xf32, #tpu.memory_space<vmem>>, vector<1x128xf32>
    %33 = vector.shape_cast %32 : vector<1x128xf32> to vector<128xf32>
    %34 = vector.shape_cast %33 : vector<128xf32> to vector<1x128xf32>
    %35 = vector.broadcast %34 : vector<1x128xf32> to vector<8x128xf32>
    %36 = arith.addf %31, %35 : vector<8x128xf32>
    %c0_15 = arith.constant 0 : index
    %c0_16 = arith.constant 0 : index
    %37 = vector.load %arg7[%c0_15, %c0_16] : memref<128x128xf32, #tpu.memory_space<vmem>>, vector<128x128xf32>
    %cst_17 = arith.constant dense<0.000000e+00> : vector<8x128xf32>
    %38 = tpu.matmul %29, %37, %cst_17 {dimension_numbers = #tpu.dot_dimension_numbers<[1], [0], [0], [1], [0, 0, 1, 1], [], []>} : vector<8x128xf32>, vector<128x128xf32>, vector<8x128xf32> -> vector<8x128xf32>
    %c0_18 = arith.constant 0 : index
    %c0_19 = arith.constant 0 : index
    %39 = vector.load %arg8[%c0_18, %c0_19] : memref<1x128xf32, #tpu.memory_space<vmem>>, vector<1x128xf32>
    %40 = vector.shape_cast %39 : vector<1x128xf32> to vector<128xf32>
    %41 = vector.shape_cast %40 : vector<128xf32> to vector<1x128xf32>
    %42 = vector.broadcast %41 : vector<1x128xf32> to vector<8x128xf32>
    %43 = arith.addf %38, %42 : vector<8x128xf32>
    %c0_20 = arith.constant 0 : index
    %c0_21 = arith.constant 0 : index
    %44 = vector.load %arg9[%c0_20, %c0_21] : memref<128x128xf32, #tpu.memory_space<vmem>>, vector<128x128xf32>
    %cst_22 = arith.constant dense<0.000000e+00> : vector<8x128xf32>
    %45 = tpu.matmul %29, %44, %cst_22 {dimension_numbers = #tpu.dot_dimension_numbers<[1], [0], [0], [1], [0, 0, 1, 1], [], []>} : vector<8x128xf32>, vector<128x128xf32>, vector<8x128xf32> -> vector<8x128xf32>
    %c0_23 = arith.constant 0 : index
    %c0_24 = arith.constant 0 : index
    %46 = vector.load %arg10[%c0_23, %c0_24] : memref<1x128xf32, #tpu.memory_space<vmem>>, vector<1x128xf32>
    %47 = vector.shape_cast %46 : vector<1x128xf32> to vector<128xf32>
    %48 = vector.shape_cast %47 : vector<128xf32> to vector<1x128xf32>
    %49 = vector.broadcast %48 : vector<1x128xf32> to vector<8x128xf32>
    %50 = arith.addf %45, %49 : vector<8x128xf32>
    %51 = vector.extract_strided_slice %36 {offsets = [0, 0], sizes = [8, 32], strides = [1, 1]} : vector<8x128xf32> to vector<8x32xf32>
    %c0_25 = arith.constant 0 : index
    %c0_26 = arith.constant 0 : index
    %c0_27 = arith.constant 0 : index
    %c0_28 = arith.constant 0 : index
    %52 = vector.load %arg11[%c0_25, %c0_26, %c0_27, %c0_28] : memref<1x4x8x32xf32, #tpu.memory_space<vmem>>, vector<1x1x8x32xf32>
    %53 = vector.shape_cast %52 : vector<1x1x8x32xf32> to vector<8x32xf32>
    %54 = vector.shape_cast %51 : vector<8x32xf32> to vector<1x1x8x32xf32>
    tpu.vector_store %arg11[%c0_25, %c0_26, %c0_27, %c0_28], %54 {strides = array<i32>} : memref<1x4x8x32xf32, #tpu.memory_space<vmem>>, vector<1x1x8x32xf32>,
    %55 = vector.extract_strided_slice %43 {offsets = [0, 0], sizes = [8, 32], strides = [1, 1]} : vector<8x128xf32> to vector<8x32xf32>
    %c0_29 = arith.constant 0 : index
    %c0_30 = arith.constant 0 : index
    %c0_31 = arith.constant 0 : index
    %c0_32 = arith.constant 0 : index
    %56 = vector.load %arg12[%c0_29, %c0_30, %c0_31, %c0_32] : memref<1x4x8x32xf32, #tpu.memory_space<vmem>>, vector<1x1x8x32xf32>
    %57 = vector.shape_cast %56 : vector<1x1x8x32xf32> to vector<8x32xf32>
    %58 = vector.shape_cast %55 : vector<8x32xf32> to vector<1x1x8x32xf32>
    tpu.vector_store %arg12[%c0_29, %c0_30, %c0_31, %c0_32], %58 {strides = array<i32>} : memref<1x4x8x32xf32, #tpu.memory_space<vmem>>, vector<1x1x8x32xf32>,
    %59 = vector.extract_strided_slice %50 {offsets = [0, 0], sizes = [8, 32], strides = [1, 1]} : vector<8x128xf32> to vector<8x32xf32>
    %c0_33 = arith.constant 0 : index
    %c0_34 = arith.constant 0 : index
    %c0_35 = arith.constant 0 : index
    %c0_36 = arith.constant 0 : index
    %60 = vector.load %arg13[%c0_33, %c0_34, %c0_35, %c0_36] : memref<1x4x8x32xf32, #tpu.memory_space<vmem>>, vector<1x1x8x32xf32>
    %61 = vector.shape_cast %60 : vector<1x1x8x32xf32> to vector<8x32xf32>
    %62 = vector.shape_cast %59 : vector<8x32xf32> to vector<1x1x8x32xf32>
    tpu.vector_store %arg13[%c0_33, %c0_34, %c0_35, %c0_36], %62 {strides = array<i32>} : memref<1x4x8x32xf32, #tpu.memory_space<vmem>>, vector<1x1x8x32xf32>,
    %63 = vector.extract_strided_slice %36 {offsets = [0, 32], sizes = [8, 32], strides = [1, 1]} : vector<8x128xf32> to vector<8x32xf32>
    %c0_37 = arith.constant 0 : index
    %c1 = arith.constant 1 : index
    %c0_38 = arith.constant 0 : index
    %c0_39 = arith.constant 0 : index
    %64 = vector.load %arg11[%c0_37, %c1, %c0_38, %c0_39] : memref<1x4x8x32xf32, #tpu.memory_space<vmem>>, vector<1x1x8x32xf32>
    %65 = vector.shape_cast %64 : vector<1x1x8x32xf32> to vector<8x32xf32>
    %66 = vector.shape_cast %63 : vector<8x32xf32> to vector<1x1x8x32xf32>
    tpu.vector_store %arg11[%c0_37, %c1, %c0_38, %c0_39], %66 {strides = array<i32>} : memref<1x4x8x32xf32, #tpu.memory_space<vmem>>, vector<1x1x8x32xf32>,
    %67 = vector.extract_strided_slice %43 {offsets = [0, 32], sizes = [8, 32], strides = [1, 1]} : vector<8x128xf32> to vector<8x32xf32>
    %c0_40 = arith.constant 0 : index
    %c1_41 = arith.constant 1 : index
    %c0_42 = arith.constant 0 : index
    %c0_43 = arith.constant 0 : index
    %68 = vector.load %arg12[%c0_40, %c1_41, %c0_42, %c0_43] : memref<1x4x8x32xf32, #tpu.memory_space<vmem>>, vector<1x1x8x32xf32>
    %69 = vector.shape_cast %68 : vector<1x1x8x32xf32> to vector<8x32xf32>
    %70 = vector.shape_cast %67 : vector<8x32xf32> to vector<1x1x8x32xf32>
    tpu.vector_store %arg12[%c0_40, %c1_41, %c0_42, %c0_43], %70 {strides = array<i32>} : memref<1x4x8x32xf32, #tpu.memory_space<vmem>>, vector<1x1x8x32xf32>,
    %71 = vector.extract_strided_slice %50 {offsets = [0, 32], sizes = [8, 32], strides = [1, 1]} : vector<8x128xf32> to vector<8x32xf32>
    %c0_44 = arith.constant 0 : index
    %c1_45 = arith.constant 1 : index
    %c0_46 = arith.constant 0 : index
    %c0_47 = arith.constant 0 : index
    %72 = vector.load %arg13[%c0_44, %c1_45, %c0_46, %c0_47] : memref<1x4x8x32xf32, #tpu.memory_space<vmem>>, vector<1x1x8x32xf32>
    %73 = vector.shape_cast %72 : vector<1x1x8x32xf32> to vector<8x32xf32>
    %74 = vector.shape_cast %71 : vector<8x32xf32> to vector<1x1x8x32xf32>
    tpu.vector_store %arg13[%c0_44, %c1_45, %c0_46, %c0_47], %74 {strides = array<i32>} : memref<1x4x8x32xf32, #tpu.memory_space<vmem>>, vector<1x1x8x32xf32>,
    %75 = vector.extract_strided_slice %36 {offsets = [0, 64], sizes = [8, 32], strides = [1, 1]} : vector<8x128xf32> to vector<8x32xf32>
    %c0_48 = arith.constant 0 : index
    %c2 = arith.constant 2 : index
    %c0_49 = arith.constant 0 : index
    %c0_50 = arith.constant 0 : index
    %76 = vector.load %arg11[%c0_48, %c2, %c0_49, %c0_50] : memref<1x4x8x32xf32, #tpu.memory_space<vmem>>, vector<1x1x8x32xf32>
    %77 = vector.shape_cast %76 : vector<1x1x8x32xf32> to vector<8x32xf32>
    %78 = vector.shape_cast %75 : vector<8x32xf32> to vector<1x1x8x32xf32>
    tpu.vector_store %arg11[%c0_48, %c2, %c0_49, %c0_50], %78 {strides = array<i32>} : memref<1x4x8x32xf32, #tpu.memory_space<vmem>>, vector<1x1x8x32xf32>,
    %79 = vector.extract_strided_slice %43 {offsets = [0, 64], sizes = [8, 32], strides = [1, 1]} : vector<8x128xf32> to vector<8x32xf32>
    %c0_51 = arith.constant 0 : index
    %c2_52 = arith.constant 2 : index
    %c0_53 = arith.constant 0 : index
    %c0_54 = arith.constant 0 : index
    %80 = vector.load %arg12[%c0_51, %c2_52, %c0_53, %c0_54] : memref<1x4x8x32xf32, #tpu.memory_space<vmem>>, vector<1x1x8x32xf32>
    %81 = vector.shape_cast %80 : vector<1x1x8x32xf32> to vector<8x32xf32>
    %82 = vector.shape_cast %79 : vector<8x32xf32> to vector<1x1x8x32xf32>
    tpu.vector_store %arg12[%c0_51, %c2_52, %c0_53, %c0_54], %82 {strides = array<i32>} : memref<1x4x8x32xf32, #tpu.memory_space<vmem>>, vector<1x1x8x32xf32>,
    %83 = vector.extract_strided_slice %50 {offsets = [0, 64], sizes = [8, 32], strides = [1, 1]} : vector<8x128xf32> to vector<8x32xf32>
    %c0_55 = arith.constant 0 : index
    %c2_56 = arith.constant 2 : index
    %c0_57 = arith.constant 0 : index
    %c0_58 = arith.constant 0 : index
    %84 = vector.load %arg13[%c0_55, %c2_56, %c0_57, %c0_58] : memref<1x4x8x32xf32, #tpu.memory_space<vmem>>, vector<1x1x8x32xf32>
    %85 = vector.shape_cast %84 : vector<1x1x8x32xf32> to vector<8x32xf32>
    %86 = vector.shape_cast %83 : vector<8x32xf32> to vector<1x1x8x32xf32>
    tpu.vector_store %arg13[%c0_55, %c2_56, %c0_57, %c0_58], %86 {strides = array<i32>} : memref<1x4x8x32xf32, #tpu.memory_space<vmem>>, vector<1x1x8x32xf32>,
    %87 = vector.extract_strided_slice %36 {offsets = [0, 96], sizes = [8, 32], strides = [1, 1]} : vector<8x128xf32> to vector<8x32xf32>
    %c0_59 = arith.constant 0 : index
    %c3 = arith.constant 3 : index
    %c0_60 = arith.constant 0 : index
    %c0_61 = arith.constant 0 : index
    %88 = vector.load %arg11[%c0_59, %c3, %c0_60, %c0_61] : memref<1x4x8x32xf32, #tpu.memory_space<vmem>>, vector<1x1x8x32xf32>
    %89 = vector.shape_cast %88 : vector<1x1x8x32xf32> to vector<8x32xf32>
    %90 = vector.shape_cast %87 : vector<8x32xf32> to vector<1x1x8x32xf32>
    tpu.vector_store %arg11[%c0_59, %c3, %c0_60, %c0_61], %90 {strides = array<i32>} : memref<1x4x8x32xf32, #tpu.memory_space<vmem>>, vector<1x1x8x32xf32>,
    %91 = vector.extract_strided_slice %43 {offsets = [0, 96], sizes = [8, 32], strides = [1, 1]} : vector<8x128xf32> to vector<8x32xf32>
    %c0_62 = arith.constant 0 : index
    %c3_63 = arith.constant 3 : index
    %c0_64 = arith.constant 0 : index
    %c0_65 = arith.constant 0 : index
    %92 = vector.load %arg12[%c0_62, %c3_63, %c0_64, %c0_65] : memref<1x4x8x32xf32, #tpu.memory_space<vmem>>, vector<1x1x8x32xf32>
    %93 = vector.shape_cast %92 : vector<1x1x8x32xf32> to vector<8x32xf32>
    %94 = vector.shape_cast %91 : vector<8x32xf32> to vector<1x1x8x32xf32>
    tpu.vector_store %arg12[%c0_62, %c3_63, %c0_64, %c0_65], %94 {strides = array<i32>} : memref<1x4x8x32xf32, #tpu.memory_space<vmem>>, vector<1x1x8x32xf32>,
    %95 = vector.extract_strided_slice %50 {offsets = [0, 96], sizes = [8, 32], strides = [1, 1]} : vector<8x128xf32> to vector<8x32xf32>
    %c0_66 = arith.constant 0 : index
    %c3_67 = arith.constant 3 : index
    %c0_68 = arith.constant 0 : index
    %c0_69 = arith.constant 0 : index
    %96 = vector.load %arg13[%c0_66, %c3_67, %c0_68, %c0_69] : memref<1x4x8x32xf32, #tpu.memory_space<vmem>>, vector<1x1x8x32xf32>
    %97 = vector.shape_cast %96 : vector<1x1x8x32xf32> to vector<8x32xf32>
    %98 = vector.shape_cast %95 : vector<8x32xf32> to vector<1x1x8x32xf32>
    tpu.vector_store %arg13[%c0_66, %c3_67, %c0_68, %c0_69], %98 {strides = array<i32>} : memref<1x4x8x32xf32, #tpu.memory_space<vmem>>, vector<1x1x8x32xf32>,
    return
  }
  func.func @transform_0(%arg0: i32, %arg1: i32) -> (i32, i32, i32) {
    %c0_i32 = arith.constant 0 : i32
    %c0_i32_0 = arith.constant 0 : i32
    return %arg0, %arg1, %c0_i32 : i32, i32, i32
  }
  func.func @transform_1(%arg0: i32, %arg1: i32) -> (i32, i32) {
    %c0_i32 = arith.constant 0 : i32
    %c0_i32_0 = arith.constant 0 : i32
    %c0_i32_1 = arith.constant 0 : i32
    return %c0_i32, %c0_i32_0 : i32, i32
  }
  func.func @transform_2(%arg0: i32, %arg1: i32) -> (i32, i32) {
    %c0_i32 = arith.constant 0 : i32
    %c0_i32_0 = arith.constant 0 : i32
    %c0_i32_1 = arith.constant 0 : i32
    return %c0_i32, %c0_i32_0 : i32, i32
  }
  func.func @transform_3(%arg0: i32, %arg1: i32) -> (i32, i32) {
    %c0_i32 = arith.constant 0 : i32
    %c0_i32_0 = arith.constant 0 : i32
    %c0_i32_1 = arith.constant 0 : i32
    return %c0_i32, %c0_i32_0 : i32, i32
  }
  func.func @transform_4(%arg0: i32, %arg1: i32) -> (i32, i32) {
    %c0_i32 = arith.constant 0 : i32
    %c0_i32_0 = arith.constant 0 : i32
    %c0_i32_1 = arith.constant 0 : i32
    return %c0_i32, %c0_i32_0 : i32, i32
  }
  func.func @transform_5(%arg0: i32, %arg1: i32) -> (i32, i32) {
    %c0_i32 = arith.constant 0 : i32
    %c0_i32_0 = arith.constant 0 : i32
    %c0_i32_1 = arith.constant 0 : i32
    return %c0_i32, %c0_i32_0 : i32, i32
  }
  func.func @transform_6(%arg0: i32, %arg1: i32) -> (i32, i32) {
    %c0_i32 = arith.constant 0 : i32
    %c0_i32_0 = arith.constant 0 : i32
    %c0_i32_1 = arith.constant 0 : i32
    return %c0_i32, %c0_i32_0 : i32, i32
  }
  func.func @transform_7(%arg0: i32, %arg1: i32) -> (i32, i32) {
    %c0_i32 = arith.constant 0 : i32
    %c0_i32_0 = arith.constant 0 : i32
    %c0_i32_1 = arith.constant 0 : i32
    return %c0_i32, %c0_i32_0 : i32, i32
  }
  func.func @transform_8(%arg0: i32, %arg1: i32) -> (i32, i32) {
    %c0_i32 = arith.constant 0 : i32
    %c0_i32_0 = arith.constant 0 : i32
    %c0_i32_1 = arith.constant 0 : i32
    return %c0_i32, %c0_i32_0 : i32, i32
  }
  func.func @transform_9(%arg0: i32, %arg1: i32) -> (i32, i32, i32, i32) {
    %c0_i32 = arith.constant 0 : i32
    %c0_i32_0 = arith.constant 0 : i32
    %c0_i32_1 = arith.constant 0 : i32
    return %arg0, %c0_i32, %arg1, %c0_i32_0 : i32, i32, i32, i32
  }
  func.func @transform_10(%arg0: i32, %arg1: i32) -> (i32, i32, i32, i32) {
    %c0_i32 = arith.constant 0 : i32
    %c0_i32_0 = arith.constant 0 : i32
    %c0_i32_1 = arith.constant 0 : i32
    return %arg0, %c0_i32, %arg1, %c0_i32_0 : i32, i32, i32, i32
  }
  func.func @transform_11(%arg0: i32, %arg1: i32) -> (i32, i32, i32, i32) {
    %c0_i32 = arith.constant 0 : i32
    %c0_i32_0 = arith.constant 0 : i32
    %c0_i32_1 = arith.constant 0 : i32
    return %arg0, %c0_i32, %arg1, %c0_i32_0 : i32, i32, i32, i32
  }
}

</mosaic_0001>

<llo_original>
// kernel: tpu_custom_call.1
$region0: #{tpu_custom_call.1}
  #allocation0 [shape = 'u32[]', space=smem, size = 0x4, offset = 0x4, fixed_abs, tag = 'smem constant byte address 0x4 - core index']
  #allocation1 [shape = 'u32[144,128]{1,0:T(1,128)}', space=vmem, size = 0x12000, scoped, tag = 'internal scratch']
  %s0 = inlined_call_operand.hbm [shape: f32[2,16,128], index: 0, kind: input, shape index: {}]
  %s1 = inlined_call_operand.vmem [shape: f32[1,128], index: 1, kind: input, shape index: {}]
  %s2 = inlined_call_operand.vmem [shape: f32[1,128], index: 2, kind: input, shape index: {}]
  %s3 = inlined_call_operand.hbm [shape: f32[128,128], index: 3, kind: input, shape index: {}]
  %s4 = inlined_call_operand.vmem [shape: f32[1,128], index: 4, kind: input, shape index: {}]
  %s5 = inlined_call_operand.hbm [shape: f32[128,128], index: 5, kind: input, shape index: {}]
  %s6 = inlined_call_operand.vmem [shape: f32[1,128], index: 6, kind: input, shape index: {}]
  %s7 = inlined_call_operand.hbm [shape: f32[128,128], index: 7, kind: input, shape index: {}]
  %s8 = inlined_call_operand.vmem [shape: f32[1,128], index: 8, kind: input, shape index: {}]
  %s9 = inlined_call_operand.hbm [shape: f32[2,4,16,32], index: 9, kind: output, shape index: {0}]
  %s10 = inlined_call_operand.hbm [shape: f32[2,4,16,32], index: 10, kind: output, shape index: {1}]
  %s11 = inlined_call_operand.hbm [shape: f32[2,4,16,32], index: 11, kind: output, shape index: {2}]
  %12 = xla_tuple %s9, %s10, %s11
  %s13 = sld [smem:[#allocation0]]
  $region101: #{tpu_custom_call.1} parent=0
    _
  %s15 = ssub.s32 1, %s13
  %s16 = scalar_select 0, %s15, %s13
  $region1: #{tpu_custom_call.1} parent=0
    #allocation2 [shape = 'u8[8192]{0}', space=vmem, size = 0x2000, scoped, tag = 'input window, operand 0']
    #allocation3 [shape = 's32[2]{0}', space=sflag, size = 0x8, scoped, tag = 'scoped memory for tpu_custom_call.1']
    #allocation4 [shape = 's32[2]{0}', space=sflag, size = 0x8, scoped, tag = 'scoped memory for tpu_custom_call.1']
    #allocation5 [shape = 'u8[65536]{0}', space=vmem, size = 0x10000, scoped, tag = 'input window, operand 3, single buffered']
    #allocation6 [shape = 's32[1]{0}', space=sflag, size = 0x4, scoped, tag = 'scoped memory for tpu_custom_call.1']
    #allocation7 [shape = 'u8[65536]{0}', space=vmem, size = 0x10000, scoped, tag = 'input window, operand 5, single buffered']
    #allocation8 [shape = 'u8[65536]{0}', space=vmem, size = 0x10000, scoped, tag = 'input window, operand 7, single buffered']
    #allocation9 [shape = 's32[1]{0}', space=sflag, size = 0x4, scoped, tag = 'scoped memory for tpu_custom_call.1']
    #allocation10 [shape = 'u8[32768]{0}', space=vmem, size = 0x8000, scoped, tag = 'output window, operand 0']
    #allocation11 [shape = 'u8[32768]{0}', space=vmem, size = 0x8000, scoped, tag = 'output window, operand 1']
    #allocation12 [shape = 's32[2]{0}', space=sflag, size = 0x8, scoped, tag = 'scoped memory for tpu_custom_call.1']
    #allocation13 [shape = 'u8[32768]{0}', space=vmem, size = 0x8000, scoped, tag = 'output window, operand 2']
    %17 = vsyncpa [#allocation3], 0
    %s18 = scalar_lea.sflag [#allocation3], 1
    %19 = vsyncpa %s18, 0
    %20 = vsyncpa [#allocation6], 0
    %21 = vsyncpa [#allocation9], 0
    %22 = vsyncpa [#allocation4], 0
    %s23 = scalar_lea.sflag [#allocation4], 1
    %24 = vsyncpa %s23, 0
    %25 = vsyncpa [#allocation12], 0
    %s26 = scalar_lea.sflag [#allocation12], 1
    %27 = vsyncpa %s26, 0
    loop: start=0, step=1, limit=6
    $region2: #{tpu_custom_call.1} parent=1 // loop_pre_header
      _
    $region3: #{tpu_custom_call.1} parent=1 // loop_header
      %s29 = sphi 0, %s33
      %p30 = scmp.ge.s32.totalorder %s29, 6
      %s36 = sphi 0, %s48
      %s37 = sphi 0, %s44
      %s38 = sphi 0, %s36
      %s39 = sphi 0, %s37
      %s40 = sphi 0, %s38
      %s41 = sphi 0, %s39
      %s53 = sphi 0, %s55
      %s56 = sphi 0, %s53
      %s57 = sphi 0, %s56
      %s73 = sphi 0, %s57
      %s77 = sphi 0, %s77
      %s79 = sphi 0, %s77
      %s80 = sphi 0, %s79
      %s94 = sphi 0, %s80
      %s98 = sphi 0, %s98
      %s100 = sphi 0, %s98
      %s101 = sphi 0, %s100
      %s115 = sphi 0, %s101
      %s119 = sphi 0, %s119
      %s121 = sphi 0, %s119
      %s122 = sphi 0, %s121
      %s136 = sphi 0, %s122
      %s140 = sphi 0, %s140
      %s142 = sphi 0, %s140
      %s143 = sphi 0, %s142
      %s157 = sphi 0, %s143
      %s161 = sphi 0, %s161
      %s163 = sphi 0, %s161
      %s164 = sphi 0, %s163
      %s178 = sphi 0, %s164
      %s182 = sphi 0, %s182
      %s184 = sphi 0, %s182
      %s185 = sphi 0, %s184
      %s199 = sphi 0, %s185
      %s203 = sphi 0, %s203
      %s205 = sphi 0, %s203
      %s206 = sphi 0, %s205
      %s220 = sphi 0, %s206
      %s224 = sphi 0, %s224
      %s226 = sphi 0, %s224
      %s227 = sphi 0, %s226
      %s241 = sphi 0, %s227
      %s249 = sphi 0, %s251
      %s252 = sphi 0, %s249
      %s253 = sphi 0, %s252
      %s269 = sphi 0, %s253
      %s277 = sphi 0, %s279
      %s280 = sphi 0, %s277
      %s281 = sphi 0, %s280
      %s297 = sphi 0, %s281
      %s305 = sphi 0, %s307
      %s308 = sphi 0, %s305
      %s309 = sphi 0, %s308
      %s325 = sphi 0, %s309
    $region4: #{tpu_custom_call.1} parent=1 // loop_header_branch
      %32 = sbr.rel (%p30) target = $region8
    $region5: #{tpu_custom_call.1} parent=1 // loop_body
      %s34 = ssub.s32 %s29, 1
      %s35 = ssub.s32 %s29, 2
      %s42 = sadd.s32 1, %s37
      %p43 = scmp.ge.s32.totalorder %s42, 2
      %s44 = scalar_select %p43, 0, %s42
      %s45 = sadd.s32 1, %s36
      %s46 = scalar_select %p43, %s45, %s36
      %p47 = scmp.ge.s32.totalorder %s46, 2
      %s48 = scalar_select %p47, 0, %s46
      %s49 = ssub.s32 %s36, %s48
      %s50 = ssub.s32 %s37, %s44
      %s51 = sor.u32 %s49, %s50
      %p52 = scmp.eq.s32.totalorder %s51, 0
      %s54 = sadd.s32 %s53, 1
      %s55 = scalar_select %p52, %s53, %s54
      %p58 = pneg %p52
      %p59 = scmp.eq.s32.totalorder %s29, 3
      %p60 = por %p58, %p59
      %p61 = scmp.ne.s32.totalorder %s53, %s56
      %p62 = scmp.eq.s32.totalorder %s29, 0
      %p63 = por %p61, %p62
      %p64 = scmp.ne.s32.totalorder %s53, %s56
      %p65 = scmp.eq.s32.totalorder %s34, 3
      %p66 = por %p64, %p65
      %p67 = scmp.ne.s32.totalorder %s56, %s57
      %p68 = scmp.eq.s32.totalorder %s34, 0
      %p69 = por %p67, %p68
      %p70 = scmp.ne.s32.totalorder %s56, %s57
      %p71 = scmp.eq.s32.totalorder %s35, 3
      %p72 = por %p70, %p71
      %p74 = scmp.ne.s32.totalorder %s57, %s73
      %p75 = scmp.eq.s32.totalorder %s35, 0
      %p76 = por %p74, %p75
      %s78 = sadd.s32 %s77, 1
      %p81 = scmp.eq.s32.totalorder %s29, 3
      %p82 = scmp.ne.s32.totalorder %s77, %s79
      %p83 = scmp.eq.s32.totalorder %s29, 0
      %p84 = por %p82, %p83
      %p85 = scmp.ne.s32.totalorder %s77, %s79
      %p86 = scmp.eq.s32.totalorder %s34, 3
      %p87 = por %p85, %p86
      %p88 = scmp.ne.s32.totalorder %s79, %s80
      %p89 = scmp.eq.s32.totalorder %s34, 0
      %p90 = por %p88, %p89
      %p91 = scmp.ne.s32.totalorder %s79, %s80
      %p92 = scmp.eq.s32.totalorder %s35, 3
      %p93 = por %p91, %p92
      %p95 = scmp.ne.s32.totalorder %s80, %s94
      %p96 = scmp.eq.s32.totalorder %s35, 0
      %p97 = por %p95, %p96
      %s99 = sadd.s32 %s98, 1
      %p102 = scmp.eq.s32.totalorder %s29, 3
      %p103 = scmp.ne.s32.totalorder %s98, %s100
      %p104 = scmp.eq.s32.totalorder %s29, 0
      %p105 = por %p103, %p104
      %p106 = scmp.ne.s32.totalorder %s98, %s100
      %p107 = scmp.eq.s32.totalorder %s34, 3
      %p108 = por %p106, %p107
      %p109 = scmp.ne.s32.totalorder %s100, %s101
      %p110 = scmp.eq.s32.totalorder %s34, 0
      %p111 = por %p109, %p110
      %p112 = scmp.ne.s32.totalorder %s100, %s101
      %p113 = scmp.eq.s32.totalorder %s35, 3
      %p114 = por %p112, %p113
      %p116 = scmp.ne.s32.totalorder %s101, %s115
      %p117 = scmp.eq.s32.totalorder %s35, 0
      %p118 = por %p116, %p117
      %s120 = sadd.s32 %s119, 1
      %p123 = scmp.eq.s32.totalorder %s29, 3
      %p124 = scmp.ne.s32.totalorder %s119, %s121
      %p125 = scmp.eq.s32.totalorder %s29, 0
      %p126 = por %p124, %p125
      %p127 = scmp.ne.s32.totalorder %s119, %s121
      %p128 = scmp.eq.s32.totalorder %s34, 3
      %p129 = por %p127, %p128
      %p130 = scmp.ne.s32.totalorder %s121, %s122
      %p131 = scmp.eq.s32.totalorder %s34, 0
      %p132 = por %p130, %p131
      %p133 = scmp.ne.s32.totalorder %s121, %s122
      %p134 = scmp.eq.s32.totalorder %s35, 3
      %p135 = por %p133, %p134
      %p137 = scmp.ne.s32.totalorder %s122, %s136
      %p138 = scmp.eq.s32.totalorder %s35, 0
      %p139 = por %p137, %p138
      %s141 = sadd.s32 %s140, 1
      %p144 = scmp.eq.s32.totalorder %s29, 3
      %p145 = scmp.ne.s32.totalorder %s140, %s142
      %p146 = scmp.eq.s32.totalorder %s29, 0
      %p147 = por %p145, %p146
      %p148 = scmp.ne.s32.totalorder %s140, %s142
      %p149 = scmp.eq.s32.totalorder %s34, 3
      %p150 = por %p148, %p149
      %p151 = scmp.ne.s32.totalorder %s142, %s143
      %p152 = scmp.eq.s32.totalorder %s34, 0
      %p153 = por %p151, %p152
      %p154 = scmp.ne.s32.totalorder %s142, %s143
      %p155 = scmp.eq.s32.totalorder %s35, 3
      %p156 = por %p154, %p155
      %p158 = scmp.ne.s32.totalorder %s143, %s157
      %p159 = scmp.eq.s32.totalorder %s35, 0
      %p160 = por %p158, %p159
      %s162 = sadd.s32 %s161, 1
      %p165 = scmp.eq.s32.totalorder %s29, 3
      %p166 = scmp.ne.s32.totalorder %s161, %s163
      %p167 = scmp.eq.s32.totalorder %s29, 0
      %p168 = por %p166, %p167
      %p169 = scmp.ne.s32.totalorder %s161, %s163
      %p170 = scmp.eq.s32.totalorder %s34, 3
      %p171 = por %p169, %p170
      %p172 = scmp.ne.s32.totalorder %s163, %s164
      %p173 = scmp.eq.s32.totalorder %s34, 0
      %p174 = por %p172, %p173
      %p175 = scmp.ne.s32.totalorder %s163, %s164
      %p176 = scmp.eq.s32.totalorder %s35, 3
      %p177 = por %p175, %p176
      %p179 = scmp.ne.s32.totalorder %s164, %s178
      %p180 = scmp.eq.s32.totalorder %s35, 0
      %p181 = por %p179, %p180
      %s183 = sadd.s32 %s182, 1
      %p186 = scmp.eq.s32.totalorder %s29, 3
      %p187 = scmp.ne.s32.totalorder %s182, %s184
      %p188 = scmp.eq.s32.totalorder %s29, 0
      %p189 = por %p187, %p188
      %p190 = scmp.ne.s32.totalorder %s182, %s184
      %p191 = scmp.eq.s32.totalorder %s34, 3
      %p192 = por %p190, %p191
      %p193 = scmp.ne.s32.totalorder %s184, %s185
      %p194 = scmp.eq.s32.totalorder %s34, 0
      %p195 = por %p193, %p194
      %p196 = scmp.ne.s32.totalorder %s184, %s185
      %p197 = scmp.eq.s32.totalorder %s35, 3
      %p198 = por %p196, %p197
      %p200 = scmp.ne.s32.totalorder %s185, %s199
      %p201 = scmp.eq.s32.totalorder %s35, 0
      %p202 = por %p200, %p201
      %s204 = sadd.s32 %s203, 1
      %p207 = scmp.eq.s32.totalorder %s29, 3
      %p208 = scmp.ne.s32.totalorder %s203, %s205
      %p209 = scmp.eq.s32.totalorder %s29, 0
      %p210 = por %p208, %p209
      %p211 = scmp.ne.s32.totalorder %s203, %s205
      %p212 = scmp.eq.s32.totalorder %s34, 3
      %p213 = por %p211, %p212
      %p214 = scmp.ne.s32.totalorder %s205, %s206
      %p215 = scmp.eq.s32.totalorder %s34, 0
      %p216 = por %p214, %p215
      %p217 = scmp.ne.s32.totalorder %s205, %s206
      %p218 = scmp.eq.s32.totalorder %s35, 3
      %p219 = por %p217, %p218
      %p221 = scmp.ne.s32.totalorder %s206, %s220
      %p222 = scmp.eq.s32.totalorder %s35, 0
      %p223 = por %p221, %p222
      %s225 = sadd.s32 %s224, 1
      %p228 = scmp.eq.s32.totalorder %s29, 3
      %p229 = scmp.ne.s32.totalorder %s224, %s226
      %p230 = scmp.eq.s32.totalorder %s29, 0
      %p231 = por %p229, %p230
      %p232 = scmp.ne.s32.totalorder %s224, %s226
      %p233 = scmp.eq.s32.totalorder %s34, 3
      %p234 = por %p232, %p233
      %p235 = scmp.ne.s32.totalorder %s226, %s227
      %p236 = scmp.eq.s32.totalorder %s34, 0
      %p237 = por %p235, %p236
      %p238 = scmp.ne.s32.totalorder %s226, %s227
      %p239 = scmp.eq.s32.totalorder %s35, 3
      %p240 = por %p238, %p239
      %p242 = scmp.ne.s32.totalorder %s227, %s241
      %p243 = scmp.eq.s32.totalorder %s35, 0
      %p244 = por %p242, %p243
      %s245 = ssub.s32 %s36, %s48
      %s246 = ssub.s32 %s37, %s44
      %s247 = sor.u32 %s245, %s246
      %p248 = scmp.eq.s32.totalorder %s247, 0
      %s250 = sadd.s32 %s249, 1
      %s251 = scalar_select %p248, %s249, %s250
      %p254 = pneg %p248
      %p255 = scmp.eq.s32.totalorder %s29, 3
      %p256 = por %p254, %p255
      %p257 = scmp.ne.s32.totalorder %s249, %s252
      %p258 = scmp.eq.s32.totalorder %s29, 0
      %p259 = por %p257, %p258
      %p260 = scmp.ne.s32.totalorder %s249, %s252
      %p261 = scmp.eq.s32.totalorder %s34, 3
      %p262 = por %p260, %p261
      %p263 = scmp.ne.s32.totalorder %s252, %s253
      %p264 = scmp.eq.s32.totalorder %s34, 0
      %p265 = por %p263, %p264
      %p266 = scmp.ne.s32.totalorder %s252, %s253
      %p267 = scmp.eq.s32.totalorder %s35, 3
      %p268 = por %p266, %p267
      %p270 = scmp.ne.s32.totalorder %s253, %s269
      %p271 = scmp.eq.s32.totalorder %s35, 0
      %p272 = por %p270, %p271
      %s273 = ssub.s32 %s36, %s48
      %s274 = ssub.s32 %s37, %s44
      %s275 = sor.u32 %s273, %s274
      %p276 = scmp.eq.s32.totalorder %s275, 0
      %s278 = sadd.s32 %s277, 1
      %s279 = scalar_select %p276, %s277, %s278
      %p282 = pneg %p276
      %p283 = scmp.eq.s32.totalorder %s29, 3
      %p284 = por %p282, %p283
      %p285 = scmp.ne.s32.totalorder %s277, %s280
      %p286 = scmp.eq.s32.totalorder %s29, 0
      %p287 = por %p285, %p286
      %p288 = scmp.ne.s32.totalorder %s277, %s280
      %p289 = scmp.eq.s32.totalorder %s34, 3
      %p290 = por %p288, %p289
      %p291 = scmp.ne.s32.totalorder %s280, %s281
      %p292 = scmp.eq.s32.totalorder %s34, 0
      %p293 = por %p291, %p292
      %p294 = scmp.ne.s32.totalorder %s280, %s281
      %p295 = scmp.eq.s32.totalorder %s35, 3
      %p296 = por %p294, %p295
      %p298 = scmp.ne.s32.totalorder %s281, %s297
      %p299 = scmp.eq.s32.totalorder %s35, 0
      %p300 = por %p298, %p299
      %s301 = ssub.s32 %s36, %s48
      %s302 = ssub.s32 %s37, %s44
      %s303 = sor.u32 %s301, %s302
      %p304 = scmp.eq.s32.totalorder %s303, 0
      %s306 = sadd.s32 %s305, 1
      %s307 = scalar_select %p304, %s305, %s306
      %p310 = pneg %p304
      %p311 = scmp.eq.s32.totalorder %s29, 3
      %p312 = por %p310, %p311
      %p313 = scmp.ne.s32.totalorder %s305, %s308
      %p314 = scmp.eq.s32.totalorder %s29, 0
      %p315 = por %p313, %p314
      %p316 = scmp.ne.s32.totalorder %s305, %s308
      %p317 = scmp.eq.s32.totalorder %s34, 3
      %p318 = por %p316, %p317
      %p319 = scmp.ne.s32.totalorder %s308, %s309
      %p320 = scmp.eq.s32.totalorder %s34, 0
      %p321 = por %p319, %p320
      %p322 = scmp.ne.s32.totalorder %s308, %s309
      %p323 = scmp.eq.s32.totalorder %s35, 3
      %p324 = por %p322, %p323
      %p326 = scmp.ne.s32.totalorder %s309, %s325
      %p327 = scmp.eq.s32.totalorder %s35, 0
      %p328 = por %p326, %p327
      %p329 = scmp.le.s32.totalorder 1, %s29
      %p330 = scmp.lt.s32.totalorder %s29, 5
      %p331 = pnand %p329, %p330
      %p332 = pneg %p331
      // Predicated region
      $region9: #{tpu_custom_call.1} parent=5 // pred_check
        _
      $region10: #{tpu_custom_call.1} parent=5 // pred_check_branch
        %334 = sbr.rel (%p331) target = $region12
      $region11: #{tpu_custom_call.1} parent=5 // pred_region
        %s335 = ssub.s32 %s29, 1
        // Predicated region
        $region13: #{tpu_custom_call.1} parent=11 // pred_check
          %p336 = pneg %p90
        $region14: #{tpu_custom_call.1} parent=11 // pred_check_branch
          %338 = sbr.rel (%p336) target = $region16
        $region15: #{tpu_custom_call.1} parent=11 // pred_region
          _
        $region16: #{tpu_custom_call.1} parent=11 // pred_fallthru
          _
        // Predicated region
        $region17: #{tpu_custom_call.1} parent=11 // pred_check
          %p339 = pneg %p111
        $region18: #{tpu_custom_call.1} parent=11 // pred_check_branch
          %341 = sbr.rel (%p339) target = $region20
        $region19: #{tpu_custom_call.1} parent=11 // pred_region
          _
        $region20: #{tpu_custom_call.1} parent=11 // pred_fallthru
          _
        // Predicated region
        $region21: #{tpu_custom_call.1} parent=11 // pred_check
          %p342 = pneg %p132
        $region22: #{tpu_custom_call.1} parent=11 // pred_check_branch
          %344 = sbr.rel (%p342) target = $region24
        $region23: #{tpu_custom_call.1} parent=11 // pred_region
          %s346 = ssub.s32 2048, 2048
          %347 = vsyncadd [#allocation6], %s346
          %s348 = sshll.u32 [#allocation5], 4
          %s349 = int_to_ptr.vmem [resolvable:$true] %s348
          %354 = dma.hbm_to_vmem [thread:$0]  %s3, 2048, %s349, [#allocation6], 128, 128, 8
        $region24: #{tpu_custom_call.1} parent=11 // pred_fallthru
          _
        // Predicated region
        $region25: #{tpu_custom_call.1} parent=11 // pred_check
          %p355 = pneg %p153
        $region26: #{tpu_custom_call.1} parent=11 // pred_check_branch
          %357 = sbr.rel (%p355) target = $region28
        $region27: #{tpu_custom_call.1} parent=11 // pred_region
          _
        $region28: #{tpu_custom_call.1} parent=11 // pred_fallthru
          _
        // Predicated region
        $region29: #{tpu_custom_call.1} parent=11 // pred_check
          %p358 = pneg %p174
        $region30: #{tpu_custom_call.1} parent=11 // pred_check_branch
          %360 = sbr.rel (%p358) target = $region32
        $region31: #{tpu_custom_call.1} parent=11 // pred_region
          %s362 = ssub.s32 2048, 2048
          %363 = vsyncadd [#allocation6], %s362
          %s364 = sshll.u32 [#allocation7], 4
          %s365 = int_to_ptr.vmem [resolvable:$true] %s364
          %370 = dma.hbm_to_vmem [thread:$0]  %s5, 2048, %s365, [#allocation6], 128, 128, 8
        $region32: #{tpu_custom_call.1} parent=11 // pred_fallthru
          _
        // Predicated region
        $region33: #{tpu_custom_call.1} parent=11 // pred_check
          %p371 = pneg %p195
        $region34: #{tpu_custom_call.1} parent=11 // pred_check_branch
          %373 = sbr.rel (%p371) target = $region36
        $region35: #{tpu_custom_call.1} parent=11 // pred_region
          _
        $region36: #{tpu_custom_call.1} parent=11 // pred_fallthru
          _
        // Predicated region
        $region37: #{tpu_custom_call.1} parent=11 // pred_check
          %p374 = pneg %p216
        $region38: #{tpu_custom_call.1} parent=11 // pred_check_branch
          %376 = sbr.rel (%p374) target = $region40
        $region39: #{tpu_custom_call.1} parent=11 // pred_region
          %s378 = ssub.s32 2048, 2048
          %379 = vsyncadd [#allocation9], %s378
          %s380 = sshll.u32 [#allocation8], 4
          %s381 = int_to_ptr.vmem [resolvable:$true] %s380
          %386 = dma.hbm_to_vmem [thread:$0]  %s7, 2048, %s381, [#allocation9], 128, 128, 8
        $region40: #{tpu_custom_call.1} parent=11 // pred_fallthru
          _
        // Predicated region
        $region41: #{tpu_custom_call.1} parent=11 // pred_check
          %p387 = pneg %p237
        $region42: #{tpu_custom_call.1} parent=11 // pred_check_branch
          %389 = sbr.rel (%p387) target = $region44
        $region43: #{tpu_custom_call.1} parent=11 // pred_region
          _
        $region44: #{tpu_custom_call.1} parent=11 // pred_fallthru
          _
      $region12: #{tpu_custom_call.1} parent=5 // pred_fallthru
        _
      %p390 = scmp.lt.s32.totalorder %s29, 4
      // Predicated region
      $region45: #{tpu_custom_call.1} parent=5 // pred_check
        %p391 = pneg %p390
      $region46: #{tpu_custom_call.1} parent=5 // pred_check_branch
        %393 = sbr.rel (%p391) target = $region48
      $region47: #{tpu_custom_call.1} parent=5 // pred_region
        // Predicated region
        $region49: #{tpu_custom_call.1} parent=47 // pred_check
          %p394 = pneg %p63
        $region50: #{tpu_custom_call.1} parent=47 // pred_check_branch
          %396 = sbr.rel (%p394) target = $region52
        $region51: #{tpu_custom_call.1} parent=47 // pred_region
          %s397 = sand.u32 %s53, 1
          %s398 = scalar_lea.sflag [#allocation3], %s397
          %s399 = sand.u32 %s53, 1
          %s400 = smul.addr %s399, 8
          %s401 = scalar_lea.vmem [#allocation2], %s400
          %s403 = ssub.s32 128, 128
          %404 = vsyncadd %s398, %s403
          %s405 = smul.addr %s36, 2
          %s406 = sadd.s32 %s37, %s405
          %s407 = smul.addr %s406, 128
          %s408 = scalar_lea.hbm %s0, %s407
          %s410 = sshll.u32 %s401, 4
          %s411 = int_to_ptr.vmem [resolvable:$true] %s410
          %413 = dma.hbm_to_vmem [thread:$0]  %s408, 128, %s411, %s398
        $region52: #{tpu_custom_call.1} parent=47 // pred_fallthru
          _
      $region48: #{tpu_custom_call.1} parent=5 // pred_fallthru
        _
      %p414 = scmp.le.s32.totalorder 1, %s29
      %p415 = scmp.lt.s32.totalorder %s29, 5
      %p416 = pnand %p414, %p415
      %p417 = pneg %p416
      // Predicated region
      $region53: #{tpu_custom_call.1} parent=5 // pred_check
        _
      $region54: #{tpu_custom_call.1} parent=5 // pred_check_branch
        %419 = sbr.rel (%p416) target = $region56
      $region55: #{tpu_custom_call.1} parent=5 // pred_region
        %s420 = ssub.s32 %s29, 1
        %s421 = sand.u32 %s56, 1
        %s422 = scalar_lea.sflag [#allocation3], %s421
        %s423 = sand.u32 %s56, 1
        %s424 = smul.addr %s423, 8
        %s425 = scalar_lea.vmem [#allocation2], %s424
        // Predicated region
        $region57: #{tpu_custom_call.1} parent=55 // pred_check
          %p426 = pneg %p69
        $region58: #{tpu_custom_call.1} parent=55 // pred_check_branch
          %428 = sbr.rel (%p426) target = $region60
        $region59: #{tpu_custom_call.1} parent=55 // pred_region
          %429 = dma.done %s422, 128
        $region60: #{tpu_custom_call.1} parent=55 // pred_fallthru
          _
        // Predicated region
        $region61: #{tpu_custom_call.1} parent=55 // pred_check
          %p430 = pneg %p132
        $region62: #{tpu_custom_call.1} parent=55 // pred_check_branch
          %432 = sbr.rel (%p430) target = $region64
        $region63: #{tpu_custom_call.1} parent=55 // pred_region
          %433 = dma.done [#allocation6], 2048
        $region64: #{tpu_custom_call.1} parent=55 // pred_fallthru
          _
        // Predicated region
        $region65: #{tpu_custom_call.1} parent=55 // pred_check
          %p434 = pneg %p174
        $region66: #{tpu_custom_call.1} parent=55 // pred_check_branch
          %436 = sbr.rel (%p434) target = $region68
        $region67: #{tpu_custom_call.1} parent=55 // pred_region
          %437 = dma.done [#allocation6], 2048
        $region68: #{tpu_custom_call.1} parent=55 // pred_fallthru
          _
        // Predicated region
        $region69: #{tpu_custom_call.1} parent=55 // pred_check
          %p438 = pneg %p216
        $region70: #{tpu_custom_call.1} parent=55 // pred_check_branch
          %440 = sbr.rel (%p438) target = $region72
        $region71: #{tpu_custom_call.1} parent=55 // pred_region
          %441 = dma.done [#allocation9], 2048
        $region72: #{tpu_custom_call.1} parent=55 // pred_fallthru
          _
        %s442 = sand.u32 %s56, 1
        %s443 = scalar_lea.sflag [#allocation3], %s442
        %s444 = sand.u32 %s56, 1
        %s445 = smul.addr %s444, 8
        %s446 = scalar_lea.vmem [#allocation2], %s445
        %p447 = pneg %p69
        %p448 = pneg %p66
        %p449 = pneg %p90
        %p450 = pneg %p87
        %p451 = pneg %p111
        %p452 = pneg %p108
        %p453 = pneg %p132
        %p454 = pneg %p129
        %p455 = pneg %p153
        %p456 = pneg %p150
        %p457 = pneg %p174
        %p458 = pneg %p171
        %p459 = pneg %p195
        %p460 = pneg %p192
        %p461 = pneg %p216
        %p462 = pneg %p213
        %p463 = pneg %p237
        %p464 = pneg %p234
        %p465 = pneg %p265
        %p466 = pneg %p262
        %s467 = sand.u32 %s252, 1
        %s468 = scalar_lea.sflag [#allocation4], %s467
        %s469 = sand.u32 %s252, 1
        %s470 = smul.addr %s469, 32
        %s471 = scalar_lea.vmem [#allocation10], %s470
        %p472 = pneg %p293
        %p473 = pneg %p290
        %s474 = sand.u32 %s34, 1
        %s475 = scalar_lea.sflag [#allocation12], %s474
        %s476 = sand.u32 %s280, 1
        %s477 = smul.addr %s476, 32
        %s478 = scalar_lea.vmem [#allocation11], %s477
        %p479 = pneg %p321
        %p480 = pneg %p318
        %s481 = sand.u32 %s34, 1
        %s482 = scalar_lea.sflag [#allocation12], %s481
        %s483 = sand.u32 %s308, 1
        %s484 = smul.addr %s483, 32
        %s485 = scalar_lea.vmem [#allocation13], %s484
        %v486 = vld [vmem:[%s425] sm:$0xff]
        %v487 = vld [vmem:[%s1] sm:$0x1]
        %v488 = vld [vmem:[%s2] sm:$0x1]
        %489 = vadd.xlane.f32.xlu0 %v486
        %v490 = vpop.xlane.xlu0 %489
        %v491 = vrcp.pop 128.0
        %v492 = vmul.f32 %v490, %v491
        %v493 = vsub.f32 %v486, %v492
        %v494 = vmul.f32 %v493, %v493
        %495 = vadd.xlane.f32.xlu0 %v494
        %v496 = vpop.xlane.xlu0 %495
        %v497 = vmul.f32 %v496, %v491
        %v498 = vadd.f32 %v497, 1e-05
        %v499 = vrsqrt.pop %v498
        %v500 = vmul.f32 %v493, %v499
        %v502 = vlaneseq
        %v503 = vshrl.u32 %v502, 7
        %v504 = vsub.s32 0, %v503
        %v505 = vrot.slane %v487, %v504
        %v507 = vmul.f32 %v500, %v505
        %v509 = vlaneseq
        %v510 = vshrl.u32 %v509, 7
        %v511 = vsub.s32 0, %v510
        %v512 = vrot.slane %v488, %v511
        %v514 = vadd.f32 %v507, %v512
        %v515 = vld [vmem:[#allocation5] sm:$0xff]
        %v516 = vld [vmem:[#allocation5 + $0x8] sm:$0xff]
        %v517 = vld [vmem:[#allocation5 + $0x10] sm:$0xff]
        %v518 = vld [vmem:[#allocation5 + $0x18] sm:$0xff]
        %v519 = vld [vmem:[#allocation5 + $0x20] sm:$0xff]
        %v520 = vld [vmem:[#allocation5 + $0x28] sm:$0xff]
        %v521 = vld [vmem:[#allocation5 + $0x30] sm:$0xff]
        %v522 = vld [vmem:[#allocation5 + $0x38] sm:$0xff]
        %v523 = vld [vmem:[#allocation5 + $0x40] sm:$0xff]
        %v524 = vld [vmem:[#allocation5 + $0x48] sm:$0xff]
        %v525 = vld [vmem:[#allocation5 + $0x50] sm:$0xff]
        %v526 = vld [vmem:[#allocation5 + $0x58] sm:$0xff]
        %v527 = vld [vmem:[#allocation5 + $0x60] sm:$0xff]
        %v528 = vld [vmem:[#allocation5 + $0x68] sm:$0xff]
        %v529 = vld [vmem:[#allocation5 + $0x70] sm:$0xff]
        %v530 = vld [vmem:[#allocation5 + $0x78] sm:$0xff]
        %v531 = vld [vmem:[%s4] sm:$0x1]
        %v533 = vlaneseq
        %v534 = vshrl.u32 %v533, 7
        %v535 = vsub.s32 0, %v534
        %v536 = vrot.slane %v531, %v535
        %538 = vmatprep.subr.mxu0 0.0
        %539 = vmatpush1.msra.mxu0 %v515
        %540 = vmatprep.subr.mxu0 0.0
        %541 = vmatpush1.msra.mxu0 %v516
        %542 = vmatprep.subr.mxu0 0.0
        %543 = vmatpush1.msra.mxu0 %v517
        %544 = vmatprep.subr.mxu0 0.0
        %545 = vmatpush1.msra.mxu0 %v518
        %546 = vmatprep.subr.mxu0 0.0
        %547 = vmatpush1.msra.mxu0 %v519
        %548 = vmatprep.subr.mxu0 0.0
        %549 = vmatpush1.msra.mxu0 %v520
        %550 = vmatprep.subr.mxu0 0.0
        %551 = vmatpush1.msra.mxu0 %v521
        %552 = vmatprep.subr.mxu0 0.0
        %553 = vmatpush1.msra.mxu0 %v522
        %554 = vmatprep.subr.mxu0 0.0
        %555 = vmatpush1.msra.mxu0 %v523
        %556 = vmatprep.subr.mxu0 0.0
        %557 = vmatpush1.msra.mxu0 %v524
        %558 = vmatprep.subr.mxu0 0.0
        %559 = vmatpush1.msra.mxu0 %v525
        %560 = vmatprep.subr.mxu0 0.0
        %561 = vmatpush1.msra.mxu0 %v526
        %562 = vmatprep.subr.mxu0 0.0
        %563 = vmatpush1.msra.mxu0 %v527
        %564 = vmatprep.subr.mxu0 0.0
        %565 = vmatpush1.msra.mxu0 %v528
        %566 = vmatprep.subr.mxu0 0.0
        %567 = vmatpush1.msra.mxu0 %v529
        %568 = vmatprep.subr.mxu0 0.0
        %569 = vmatpush1.msra.mxu0 %v530
        %570 = vmatprep.subr.mxu0 0.0
        %571 = vmatpush1.msra.mxu0 0.0
        %572 = vmatprep.subr.mxu0 0.0
        %573 = vmatpush1.msra.mxu0 0.0
        %574 = vmatprep.subr.mxu0 0.0
        %575 = vmatpush1.msra.mxu0 0.0
        %576 = vmatprep.subr.mxu0 0.0
        %577 = vmatpush1.msra.mxu0 0.0
        %578 = vmatprep.subr.mxu0 0.0
        %579 = vmatpush1.msra.mxu0 0.0
        %580 = vmatprep.subr.mxu0 0.0
        %581 = vmatpush1.msra.mxu0 0.0
        %582 = vmatprep.subr.mxu0 0.0
        %583 = vmatpush1.msra.mxu0 0.0
        %584 = vmatprep.subr.mxu0 0.0
        %585 = vmatpush1.msra.mxu0 0.0
        %586 = vmatprep.subr.mxu0 0.0
        %587 = vmatpush1.msra.mxu0 0.0
        %588 = vmatprep.subr.mxu0 0.0
        %589 = vmatpush1.msra.mxu0 0.0
        %590 = vmatprep.subr.mxu0 0.0
        %591 = vmatpush1.msra.mxu0 0.0
        %592 = vmatprep.subr.mxu0 0.0
        %593 = vmatpush1.msra.mxu0 0.0
        %594 = vmatprep.subr.mxu0 0.0
        %595 = vmatpush1.msra.mxu0 0.0
        %596 = vmatprep.subr.mxu0 0.0
        %597 = vmatpush1.msra.mxu0 0.0
        %598 = vmatprep.subr.mxu0 0.0
        %599 = vmatpush1.msra.mxu0 0.0
        %600 = vmatprep.subr.mxu0 0.0
        %601 = vmatpush1.msra.mxu0 0.0
        %602 = vmatprep.mubr.f32.mxu0 0.0
        %603 = vmatmul.mubr.f32.gmra.mrb[0].mxu0 %v514
        %v604 = vpop.f32.mrb[0].mxu0
        %v605 = vadd.f32 %v536, %v604
        %v606 = vpop.f32.mrb[0].mxu0
        %607 = vdwg.mxu0
        %v608 = vld [vmem:[#allocation7] sm:$0xff]
        %v609 = vld [vmem:[#allocation7 + $0x8] sm:$0xff]
        %v610 = vld [vmem:[#allocation7 + $0x10] sm:$0xff]
        %v611 = vld [vmem:[#allocation7 + $0x18] sm:$0xff]
        %v612 = vld [vmem:[#allocation7 + $0x20] sm:$0xff]
        %v613 = vld [vmem:[#allocation7 + $0x28] sm:$0xff]
        %v614 = vld [vmem:[#allocation7 + $0x30] sm:$0xff]
        %v615 = vld [vmem:[#allocation7 + $0x38] sm:$0xff]
        %v616 = vld [vmem:[#allocation7 + $0x40] sm:$0xff]
        %v617 = vld [vmem:[#allocation7 + $0x48] sm:$0xff]
        %v618 = vld [vmem:[#allocation7 + $0x50] sm:$0xff]
        %v619 = vld [vmem:[#allocation7 + $0x58] sm:$0xff]
        %v620 = vld [vmem:[#allocation7 + $0x60] sm:$0xff]
        %v621 = vld [vmem:[#allocation7 + $0x68] sm:$0xff]
        %v622 = vld [vmem:[#allocation7 + $0x70] sm:$0xff]
        %v623 = vld [vmem:[#allocation7 + $0x78] sm:$0xff]
        %v624 = vld [vmem:[%s6] sm:$0x1]
        %v626 = vlaneseq
        %v627 = vshrl.u32 %v626, 7
        %v628 = vsub.s32 0, %v627
        %v629 = vrot.slane %v624, %v628
        %631 = vmatprep.subr.mxu0 0.0
        %632 = vmatpush1.msra.mxu0 %v608
        %633 = vmatprep.subr.mxu0 0.0
        %634 = vmatpush1.msra.mxu0 %v609
        %635 = vmatprep.subr.mxu0 0.0
        %636 = vmatpush1.msra.mxu0 %v610
        %637 = vmatprep.subr.mxu0 0.0
        %638 = vmatpush1.msra.mxu0 %v611
        %639 = vmatprep.subr.mxu0 0.0
        %640 = vmatpush1.msra.mxu0 %v612
        %641 = vmatprep.subr.mxu0 0.0
        %642 = vmatpush1.msra.mxu0 %v613
        %643 = vmatprep.subr.mxu0 0.0
        %644 = vmatpush1.msra.mxu0 %v614
        %645 = vmatprep.subr.mxu0 0.0
        %646 = vmatpush1.msra.mxu0 %v615
        %647 = vmatprep.subr.mxu0 0.0
        %648 = vmatpush1.msra.mxu0 %v616
        %649 = vmatprep.subr.mxu0 0.0
        %650 = vmatpush1.msra.mxu0 %v617
        %651 = vmatprep.subr.mxu0 0.0
        %652 = vmatpush1.msra.mxu0 %v618
        %653 = vmatprep.subr.mxu0 0.0
        %654 = vmatpush1.msra.mxu0 %v619
        %655 = vmatprep.subr.mxu0 0.0
        %656 = vmatpush1.msra.mxu0 %v620
        %657 = vmatprep.subr.mxu0 0.0
        %658 = vmatpush1.msra.mxu0 %v621
        %659 = vmatprep.subr.mxu0 0.0
        %660 = vmatpush1.msra.mxu0 %v622
        %661 = vmatprep.subr.mxu0 0.0
        %662 = vmatpush1.msra.mxu0 %v623
        %663 = vmatprep.subr.mxu0 0.0
        %664 = vmatpush1.msra.mxu0 0.0
        %665 = vmatprep.subr.mxu0 0.0
        %666 = vmatpush1.msra.mxu0 0.0
        %667 = vmatprep.subr.mxu0 0.0
        %668 = vmatpush1.msra.mxu0 0.0
        %669 = vmatprep.subr.mxu0 0.0
        %670 = vmatpush1.msra.mxu0 0.0
        %671 = vmatprep.subr.mxu0 0.0
        %672 = vmatpush1.msra.mxu0 0.0
        %673 = vmatprep.subr.mxu0 0.0
        %674 = vmatpush1.msra.mxu0 0.0
        %675 = vmatprep.subr.mxu0 0.0
        %676 = vmatpush1.msra.mxu0 0.0
        %677 = vmatprep.subr.mxu0 0.0
        %678 = vmatpush1.msra.mxu0 0.0
        %679 = vmatprep.subr.mxu0 0.0
        %680 = vmatpush1.msra.mxu0 0.0
        %681 = vmatprep.subr.mxu0 0.0
        %682 = vmatpush1.msra.mxu0 0.0
        %683 = vmatprep.subr.mxu0 0.0
        %684 = vmatpush1.msra.mxu0 0.0
        %685 = vmatprep.subr.mxu0 0.0
        %686 = vmatpush1.msra.mxu0 0.0
        %687 = vmatprep.subr.mxu0 0.0
        %688 = vmatpush1.msra.mxu0 0.0
        %689 = vmatprep.subr.mxu0 0.0
        %690 = vmatpush1.msra.mxu0 0.0
        %691 = vmatprep.subr.mxu0 0.0
        %692 = vmatpush1.msra.mxu0 0.0
        %693 = vmatprep.subr.mxu0 0.0
        %694 = vmatpush1.msra.mxu0 0.0
        %695 = vmatprep.mubr.f32.mxu0 0.0
        %696 = vmatmul.mubr.f32.gmra.mrb[0].mxu0 %v514
        %v697 = vpop.f32.mrb[0].mxu0
        %v698 = vadd.f32 %v629, %v697
        %v699 = vpop.f32.mrb[0].mxu0
        %700 = vdwg.mxu0
        %v701 = vld [vmem:[#allocation8] sm:$0xff]
        %v702 = vld [vmem:[#allocation8 + $0x8] sm:$0xff]
        %v703 = vld [vmem:[#allocation8 + $0x10] sm:$0xff]
        %v704 = vld [vmem:[#allocation8 + $0x18] sm:$0xff]
        %v705 = vld [vmem:[#allocation8 + $0x20] sm:$0xff]
        %v706 = vld [vmem:[#allocation8 + $0x28] sm:$0xff]
        %v707 = vld [vmem:[#allocation8 + $0x30] sm:$0xff]
        %v708 = vld [vmem:[#allocation8 + $0x38] sm:$0xff]
        %v709 = vld [vmem:[#allocation8 + $0x40] sm:$0xff]
        %v710 = vld [vmem:[#allocation8 + $0x48] sm:$0xff]
        %v711 = vld [vmem:[#allocation8 + $0x50] sm:$0xff]
        %v712 = vld [vmem:[#allocation8 + $0x58] sm:$0xff]
        %v713 = vld [vmem:[#allocation8 + $0x60] sm:$0xff]
        %v714 = vld [vmem:[#allocation8 + $0x68] sm:$0xff]
        %v715 = vld [vmem:[#allocation8 + $0x70] sm:$0xff]
        %v716 = vld [vmem:[#allocation8 + $0x78] sm:$0xff]
        %v717 = vld [vmem:[%s8] sm:$0x1]
        %v719 = vlaneseq
        %v720 = vshrl.u32 %v719, 7
        %v721 = vsub.s32 0, %v720
        %v722 = vrot.slane %v717, %v721
        %724 = vmatprep.subr.mxu0 0.0
        %725 = vmatpush1.msra.mxu0 %v701
        %726 = vmatprep.subr.mxu0 0.0
        %727 = vmatpush1.msra.mxu0 %v702
        %728 = vmatprep.subr.mxu0 0.0
        %729 = vmatpush1.msra.mxu0 %v703
        %730 = vmatprep.subr.mxu0 0.0
        %731 = vmatpush1.msra.mxu0 %v704
        %732 = vmatprep.subr.mxu0 0.0
        %733 = vmatpush1.msra.mxu0 %v705
        %734 = vmatprep.subr.mxu0 0.0
        %735 = vmatpush1.msra.mxu0 %v706
        %736 = vmatprep.subr.mxu0 0.0
        %737 = vmatpush1.msra.mxu0 %v707
        %738 = vmatprep.subr.mxu0 0.0
        %739 = vmatpush1.msra.mxu0 %v708
        %740 = vmatprep.subr.mxu0 0.0
        %741 = vmatpush1.msra.mxu0 %v709
        %742 = vmatprep.subr.mxu0 0.0
        %743 = vmatpush1.msra.mxu0 %v710
        %744 = vmatprep.subr.mxu0 0.0
        %745 = vmatpush1.msra.mxu0 %v711
        %746 = vmatprep.subr.mxu0 0.0
        %747 = vmatpush1.msra.mxu0 %v712
        %748 = vmatprep.subr.mxu0 0.0
        %749 = vmatpush1.msra.mxu0 %v713
        %750 = vmatprep.subr.mxu0 0.0
        %751 = vmatpush1.msra.mxu0 %v714
        %752 = vmatprep.subr.mxu0 0.0
        %753 = vmatpush1.msra.mxu0 %v715
        %754 = vmatprep.subr.mxu0 0.0
        %755 = vmatpush1.msra.mxu0 %v716
        %756 = vmatprep.subr.mxu0 0.0
        %757 = vmatpush1.msra.mxu0 0.0
        %758 = vmatprep.subr.mxu0 0.0
        %759 = vmatpush1.msra.mxu0 0.0
        %760 = vmatprep.subr.mxu0 0.0
        %761 = vmatpush1.msra.mxu0 0.0
        %762 = vmatprep.subr.mxu0 0.0
        %763 = vmatpush1.msra.mxu0 0.0
        %764 = vmatprep.subr.mxu0 0.0
        %765 = vmatpush1.msra.mxu0 0.0
        %766 = vmatprep.subr.mxu0 0.0
        %767 = vmatpush1.msra.mxu0 0.0
        %768 = vmatprep.subr.mxu0 0.0
        %769 = vmatpush1.msra.mxu0 0.0
        %770 = vmatprep.subr.mxu0 0.0
        %771 = vmatpush1.msra.mxu0 0.0
        %772 = vmatprep.subr.mxu0 0.0
        %773 = vmatpush1.msra.mxu0 0.0
        %774 = vmatprep.subr.mxu0 0.0
        %775 = vmatpush1.msra.mxu0 0.0
        %776 = vmatprep.subr.mxu0 0.0
        %777 = vmatpush1.msra.mxu0 0.0
        %778 = vmatprep.subr.mxu0 0.0
        %779 = vmatpush1.msra.mxu0 0.0
        %780 = vmatprep.subr.mxu0 0.0
        %781 = vmatpush1.msra.mxu0 0.0
        %782 = vmatprep.subr.mxu0 0.0
        %783 = vmatpush1.msra.mxu0 0.0
        %784 = vmatprep.subr.mxu0 0.0
        %785 = vmatpush1.msra.mxu0 0.0
        %786 = vmatprep.subr.mxu0 0.0
        %787 = vmatpush1.msra.mxu0 0.0
        %788 = vmatprep.mubr.f32.mxu0 0.0
        %789 = vmatmul.mubr.f32.gmra.mrb[0].mxu0 %v514
        %v790 = vpop.f32.mrb[0].mxu0
        %v791 = vadd.f32 %v722, %v790
        %v792 = vpop.f32.mrb[0].mxu0
        %793 = vdwg.mxu0
        %vm794 = vcmask 261120
        %795 = vst.msk [vmem:[%s471] sm:$0xff] %vm794, %v605
        %796 = vst.msk [vmem:[%s478] sm:$0xff] %vm794, %v698
        %797 = vst.msk [vmem:[%s485] sm:$0xff] %vm794, %v791
        %799 = vrot.lane.b32.xlu0 %v605, 96
        %v800 = vpop.permute.xlu0 %799
        %s802 = scalar_lea.vmem %s471, 8 [#allocation10]
        %803 = vst.msk [vmem:[%s802] sm:$0xff] %vm794, %v800
        %805 = vrot.lane.b32.xlu0 %v698, 96
        %v806 = vpop.permute.xlu0 %805
        %s808 = scalar_lea.vmem %s478, 8 [#allocation11]
        %809 = vst.msk [vmem:[%s808] sm:$0xff] %vm794, %v806
        %811 = vrot.lane.b32.xlu0 %v791, 96
        %v812 = vpop.permute.xlu0 %811
        %s814 = scalar_lea.vmem %s485, 8 [#allocation13]
        %815 = vst.msk [vmem:[%s814] sm:$0xff] %vm794, %v812
        %816 = vrot.lane.b32.xlu0 %v605, 64
        %v817 = vpop.permute.xlu0 %816
        %s819 = scalar_lea.vmem %s471, 16 [#allocation10]
        %820 = vst.msk [vmem:[%s819] sm:$0xff] %vm794, %v817
        %821 = vrot.lane.b32.xlu0 %v698, 64
        %v822 = vpop.permute.xlu0 %821
        %s824 = scalar_lea.vmem %s478, 16 [#allocation11]
        %825 = vst.msk [vmem:[%s824] sm:$0xff] %vm794, %v822
        %826 = vrot.lane.b32.xlu0 %v791, 64
        %v827 = vpop.permute.xlu0 %826
        %s829 = scalar_lea.vmem %s485, 16 [#allocation13]
        %830 = vst.msk [vmem:[%s829] sm:$0xff] %vm794, %v827
        %831 = vrot.lane.b32.xlu0 %v605, 32
        %v832 = vpop.permute.xlu0 %831
        %s834 = scalar_lea.vmem %s471, 24 [#allocation10]
        %835 = vst.msk [vmem:[%s834] sm:$0xff] %vm794, %v832
        %836 = vrot.lane.b32.xlu0 %v698, 32
        %v837 = vpop.permute.xlu0 %836
        %s839 = scalar_lea.vmem %s478, 24 [#allocation11]
        %840 = vst.msk [vmem:[%s839] sm:$0xff] %vm794, %v837
        %841 = vrot.lane.b32.xlu0 %v791, 32
        %v842 = vpop.permute.xlu0 %841
        %s844 = scalar_lea.vmem %s485, 24 [#allocation13]
        %845 = vst.msk [vmem:[%s844] sm:$0xff] %vm794, %v842
        %s846 = sand.u32 %s252, 1
        %s847 = scalar_lea.sflag [#allocation4], %s846
        %s848 = sand.u32 %s252, 1
        %s849 = smul.addr %s848, 32
        %s850 = scalar_lea.vmem [#allocation10], %s849
        %s851 = sand.u32 %s34, 1
        %s852 = scalar_lea.sflag [#allocation12], %s851
        %s853 = sand.u32 %s280, 1
        %s854 = smul.addr %s853, 32
        %s855 = scalar_lea.vmem [#allocation11], %s854
        %s856 = sand.u32 %s34, 1
        %s857 = scalar_lea.sflag [#allocation12], %s856
        %s858 = sand.u32 %s308, 1
        %s859 = smul.addr %s858, 32
        %s860 = scalar_lea.vmem [#allocation13], %s859
        // Predicated region
        $region73: #{tpu_custom_call.1} parent=55 // pred_check
          %p861 = pneg %p262
        $region74: #{tpu_custom_call.1} parent=55 // pred_check_branch
          %863 = sbr.rel (%p861) target = $region76
        $region75: #{tpu_custom_call.1} parent=55 // pred_region
          %s865 = ssub.s32 512, 512
          %866 = vsyncadd %s847, %s865
          %s867 = smul.addr %s38, 8
          %s868 = sadd.s32 %s39, %s867
          %s869 = smul.addr %s868, 128
          %s870 = scalar_lea.hbm %s9, %s869
          %s871 = sshll.u32 %s850, 4
          %s872 = int_to_ptr.vmem [resolvable:$true] %s871
          %877 = dma.vmem_to_hbm [thread:$0]  %s872, 512, %s870, %s847, 128, 256, 8
        $region76: #{tpu_custom_call.1} parent=55 // pred_fallthru
          _
        // Predicated region
        $region77: #{tpu_custom_call.1} parent=55 // pred_check
          %p878 = pneg %p290
        $region78: #{tpu_custom_call.1} parent=55 // pred_check_branch
          %880 = sbr.rel (%p878) target = $region80
        $region79: #{tpu_custom_call.1} parent=55 // pred_region
          %s882 = ssub.s32 512, 512
          %883 = vsyncadd %s852, %s882
          %s884 = smul.addr %s38, 8
          %s885 = sadd.s32 %s39, %s884
          %s886 = smul.addr %s885, 128
          %s887 = scalar_lea.hbm %s10, %s886
          %s888 = sshll.u32 %s855, 4
          %s889 = int_to_ptr.vmem [resolvable:$true] %s888
          %894 = dma.vmem_to_hbm [thread:$0]  %s889, 512, %s887, %s852, 128, 256, 8
        $region80: #{tpu_custom_call.1} parent=55 // pred_fallthru
          _
        // Predicated region
        $region81: #{tpu_custom_call.1} parent=55 // pred_check
          %p895 = pneg %p318
        $region82: #{tpu_custom_call.1} parent=55 // pred_check_branch
          %897 = sbr.rel (%p895) target = $region84
        $region83: #{tpu_custom_call.1} parent=55 // pred_region
          %s899 = ssub.s32 512, 512
          %900 = vsyncadd %s857, %s899
          %s901 = smul.addr %s38, 8
          %s902 = sadd.s32 %s39, %s901
          %s903 = smul.addr %s902, 128
          %s904 = scalar_lea.hbm %s11, %s903
          %s905 = sshll.u32 %s860, 4
          %s906 = int_to_ptr.vmem [resolvable:$true] %s905
          %911 = dma.vmem_to_hbm [thread:$0]  %s906, 512, %s904, %s857, 128, 256, 8
        $region84: #{tpu_custom_call.1} parent=55 // pred_fallthru
          _
      $region56: #{tpu_custom_call.1} parent=5 // pred_fallthru
        _
      %p912 = scmp.le.s32.totalorder 2, %s29
      // Predicated region
      $region85: #{tpu_custom_call.1} parent=5 // pred_check
        %p913 = pneg %p912
      $region86: #{tpu_custom_call.1} parent=5 // pred_check_branch
        %915 = sbr.rel (%p913) target = $region88
      $region87: #{tpu_custom_call.1} parent=5 // pred_region
        %s916 = ssub.s32 %s29, 2
        // Predicated region
        $region89: #{tpu_custom_call.1} parent=87 // pred_check
          %p917 = pneg %p268
        $region90: #{tpu_custom_call.1} parent=87 // pred_check_branch
          %919 = sbr.rel (%p917) target = $region92
        $region91: #{tpu_custom_call.1} parent=87 // pred_region
          %s920 = sand.u32 %s253, 1
          %s921 = scalar_lea.sflag [#allocation4], %s920
          %s922 = sand.u32 %s253, 1
          %s923 = smul.addr %s922, 32
          %s924 = scalar_lea.vmem [#allocation10], %s923
          %925 = dma.done %s921, 512
        $region92: #{tpu_custom_call.1} parent=87 // pred_fallthru
          _
        // Predicated region
        $region93: #{tpu_custom_call.1} parent=87 // pred_check
          %p926 = pneg %p296
        $region94: #{tpu_custom_call.1} parent=87 // pred_check_branch
          %928 = sbr.rel (%p926) target = $region96
        $region95: #{tpu_custom_call.1} parent=87 // pred_region
          %s929 = sand.u32 %s35, 1
          %s930 = scalar_lea.sflag [#allocation12], %s929
          %s931 = sand.u32 %s281, 1
          %s932 = smul.addr %s931, 32
          %s933 = scalar_lea.vmem [#allocation11], %s932
          %934 = dma.done %s930, 512
        $region96: #{tpu_custom_call.1} parent=87 // pred_fallthru
          _
        // Predicated region
        $region97: #{tpu_custom_call.1} parent=87 // pred_check
          %p935 = pneg %p324
        $region98: #{tpu_custom_call.1} parent=87 // pred_check_branch
          %937 = sbr.rel (%p935) target = $region100
        $region99: #{tpu_custom_call.1} parent=87 // pred_region
          %s938 = sand.u32 %s35, 1
          %s939 = scalar_lea.sflag [#allocation12], %s938
          %s940 = sand.u32 %s309, 1
          %s941 = smul.addr %s940, 32
          %s942 = scalar_lea.vmem [#allocation13], %s941
          %943 = dma.done %s939, 512
        $region100: #{tpu_custom_call.1} parent=87 // pred_fallthru
          _
      $region88: #{tpu_custom_call.1} parent=5 // pred_fallthru
        _
    $region6: #{tpu_custom_call.1} parent=1 // loop_footer
      %s33 = sadd.s32 1, %s29
    $region7: #{tpu_custom_call.1} parent=1 // loop_footer_branch
      %28 = sbr.rel target = $region3
    $region8: #{tpu_custom_call.1} parent=1 // loop_exit
      _
    %944 = vsyncpa [#allocation3], 1
    %s945 = scalar_lea.sflag [#allocation3], 1
    %946 = vsyncpa %s945, 1
    %947 = vsyncpa [#allocation6], 1
    %948 = vsyncpa [#allocation9], 1
    %949 = vsyncpa [#allocation4], 1
    %s950 = scalar_lea.sflag [#allocation4], 1
    %951 = vsyncpa %s950, 1
    %952 = vsyncpa [#allocation12], 1
    %s953 = scalar_lea.sflag [#allocation12], 1
    %954 = vsyncpa %s953, 1

</llo_original>
